<compile_context>
chip_gen: v5e
topology: v5e:2x2
jax: 0.10.0
libtpu: 0.0.40
codegen_flags: <defaults>
</compile_context>

<pallas_src>
import numpy as np
import jax
import jax.numpy as jnp
from jax.experimental import pallas as pl
from jax.experimental.pallas import tpu as pltpu


# -----------------------------------------------------------------------------
# Pallas kernel: fused LSTM (1 layer) + Linear + LogSoftmax(dim=0)
# -----------------------------------------------------------------------------
def _seq_lstm_kernel(x_ref, h0_ref, c0_ref, wih_ref, whh_ref, b_ref,
                     fcw_ref, fcb_ref, out_ref, hn_ref, cn_ref):
    """
    x_ref:   (L*B, I)   seq-major input, flattened (row t*B + b == x[t, b])
    h0_ref:  (B, H)     initial hidden state
    c0_ref:  (B, H)     initial cell state
    wih_ref: (I, 4H)    input->hidden weights, gate order (i, f, o, g)
    whh_ref: (H, 4H)    hidden->hidden weights, gate order (i, f, o, g)
    b_ref:   (1, 4H)    bias_ih + bias_hh, gate order (i, f, o, g)
    fcw_ref: (H, O)     fc weight (transposed)
    fcb_ref: (1, O)     fc bias
    out_ref: (L*B, O)   log_softmax(fc(lstm(x)), dim=0), flattened like x
    hn_ref:  (B, H)     final hidden state
    cn_ref:  (B, H)     final cell state
    """
    B, H = h0_ref.shape
    L = x_ref.shape[0] // B

    # 1) Hoisted input projection: ONE (L*B, I) x (I, 4H) MXU matmul + bias.
    xp = jnp.dot(x_ref[...], wih_ref[...],
                 preferred_element_type=jnp.float32) + b_ref[...]        # (L*B, 4H)

    # 2) Recurrence, fully unrolled (L is small & static); h/c live in vregs.
    whh = whh_ref[...]
    h = h0_ref[...]
    c = c0_ref[...]
    hs = []
    for t in range(L):
        gates = xp[t * B:(t + 1) * B, :] + jnp.dot(
            h, whh, preferred_element_type=jnp.float32)                  # (B, 4H)
        sig = jax.nn.sigmoid(gates[:, :3 * H])        # contiguous (i, f, o)
        i_g = sig[:, 0:H]
        f_g = sig[:, H:2 * H]
        o_g = sig[:, 2 * H:3 * H]
        g_g = jnp.tanh(gates[:, 3 * H:])
        c = f_g * c + i_g * g_g
        h = o_g * jnp.tanh(c)
        hs.append(h)

    hn_ref[...] = h
    cn_ref[...] = c

    # 3) Dropout is identity at inference.
    #    fc over the whole sequence as ONE (L*B, H) x (H, O) matmul.
    hs_all = jnp.concatenate(hs, axis=0)                                 # (L*B, H)
    z = jnp.dot(hs_all, fcw_ref[...],
                preferred_element_type=jnp.float32) + fcb_ref[...]       # (L*B, O)

    # 4) LogSoftmax over dim 0 (the sequence dimension) for every (b, o).
    zt = [z[t * B:(t + 1) * B, :] for t in range(L)]                     # L x (B, O)
    m = zt[0]
    for t in range(1, L):
        m = jnp.maximum(m, zt[t])
    s = jnp.exp(zt[0] - m)
    for t in range(1, L):
        s = s + jnp.exp(zt[t] - m)
    lse = m + jnp.log(s)                                                 # (B, O)
    out_ref[...] = z - jnp.tile(lse, (L, 1))                             # single dense store


# -----------------------------------------------------------------------------
# Wrapper
# -----------------------------------------------------------------------------
def sequential_lstm_forward(x, hidden, prepped):
    """x: (L, B, sentence_len); hidden: (h0, c0), each (1, B, H).
    Returns (out, (h_n, c_n)) matching the torch module in eval mode."""
    L, B, I = x.shape
    h0, c0 = hidden
    H = h0.shape[-1]
    O = prepped['fcw_t'].shape[1]
    vmem = pl.BlockSpec(memory_space=pltpu.MemorySpace.VMEM)

    out2d, hn, cn = pl.pallas_call(
        _seq_lstm_kernel,
        out_shape=(
            jax.ShapeDtypeStruct((L * B, O), jnp.float32),
            jax.ShapeDtypeStruct((B, H), jnp.float32),
            jax.ShapeDtypeStruct((B, H), jnp.float32),
        ),
        in_specs=[vmem] * 8,
        out_specs=(vmem, vmem, vmem),
    )(
        x.reshape(L * B, I),
        h0.reshape(B, H),
        c0.reshape(B, H),
        prepped['wih_t'], prepped['whh_t'], prepped['bias'],
        prepped['fcw_t'], prepped['fcb'],
    )
    return out2d.reshape(L, B, O), (hn.reshape(1, B, H), cn.reshape(1, B, H))


# -----------------------------------------------------------------------------
# Parameters (torch-equivalent init) and one-time layout prep
# -----------------------------------------------------------------------------
def init_params(key, sentence_len, hidden_size):
    H = hidden_size
    I = sentence_len
    ks = jax.random.split(key, 6)
    b = 1.0 / np.sqrt(H)
    return dict(
        w_ih=jax.random.uniform(ks[0], (4 * H, I), jnp.float32, -b, b),
        w_hh=jax.random.uniform(ks[1], (4 * H, H), jnp.float32, -b, b),
        b_ih=jax.random.uniform(ks[2], (4 * H,), jnp.float32, -b, b),
        b_hh=jax.random.uniform(ks[3], (4 * H,), jnp.float32, -b, b),
        fc_w=jax.random.uniform(ks[4], (I, H), jnp.float32, -b, b),
        fc_b=jax.random.uniform(ks[5], (I,), jnp.float32, -b, b),
    )


def prepare_params(p):
    """One-time prep: transpose weights, fold biases, reorder gates from
    torch's (i, f, g, o) to (i, f, o, g) so the kernel applies sigmoid to one
    contiguous 3H slice."""
    H = p['w_hh'].shape[1]

    def reorder(w):
        i, f, g, o = jnp.split(w, 4, axis=0)
        return jnp.concatenate([i, f, o, g], axis=0)

    return dict(
        wih_t=jnp.transpose(reorder(p['w_ih'])),                  # (I, 4H)
        whh_t=jnp.transpose(reorder(p['w_hh'])),                  # (H, 4H)
        bias=reorder(p['b_ih'] + p['b_hh']).reshape(1, 4 * H),    # (1, 4H)
        fcw_t=jnp.transpose(p['fc_w']),                            # (H, O)
        fcb=p['fc_b'].reshape(1, -1),                              # (1, O)
    )


# -----------------------------------------------------------------------------
# Pure-JAX reference of the torch module (eval mode) for correctness check
# -----------------------------------------------------------------------------
def reference_forward(x, hidden, p):
    L, B, _ = x.shape
    H = p['w_hh'].shape[1]
    h = hidden[0][0]
    c = hidden[1][0]
    wih_t = p['w_ih'].T
    whh_t = p['w_hh'].T
    bias = p['b_ih'] + p['b_hh']
    outs = []
    for t in range(L):
        g = x[t] @ wih_t + h @ whh_t + bias
        i_g = jax.nn.sigmoid(g[:, 0:H])
        f_g = jax.nn.sigmoid(g[:, H:2 * H])
        g_g = jnp.tanh(g[:, 2 * H:3 * H])
        o_g = jax.nn.sigmoid(g[:, 3 * H:4 * H])
        c = f_g * c + i_g * g_g
        h = o_g * jnp.tanh(c)
        outs.append(h)
    r = jnp.stack(outs, axis=0)                        # (L, B, H)
    z = r @ p['fc_w'].T + p['fc_b']                    # (L, B, O)
    return jax.nn.log_softmax(z, axis=0), (h[None], c[None])


# -----------------------------------------------------------------------------
if __name__ == "__main__":
    key = jax.random.PRNGKey(0)
    kx, kp = jax.random.split(key)

    seq_len = 8            # L (sequence_len)
    batch = 2              # B
    sentence_len = 16      # LSTM input size == fc output size
    hidden_size = 32       # H

    x = jax.random.normal(kx, (seq_len, batch, sentence_len), jnp.float32)
    params = init_params(kp, sentence_len, hidden_size)
    prepped = prepare_params(params)

    # initHidden(batch_size): zeros of shape (n_layers=1, B, H)
    # TODO(synk): n_layers > 1 not implemented (module default n_layers=1).
    h0 = jnp.zeros((1, batch, hidden_size), jnp.float32)
    c0 = jnp.zeros((1, batch, hidden_size), jnp.float32)

    out, (hn, cn) = sequential_lstm_forward(x, (h0, c0), prepped)
    out, hn, cn = jax.block_until_ready((out, hn, cn))

    assert out.shape == (seq_len, batch, sentence_len)
    assert hn.shape == (1, batch, hidden_size) and cn.shape == (1, batch, hidden_size)
    assert bool(jnp.all(jnp.isfinite(out)))
    # log_softmax(dim=0): probabilities along the sequence dim sum to ~1
    assert bool(jnp.allclose(jnp.sum(jnp.exp(out), axis=0), 1.0, atol=1e-4))

    # parity with a pure-JAX reference of the torch module (eval mode)
    ref_out, (ref_hn, ref_cn) = reference_forward(x, (h0, c0), params)
    assert bool(jnp.allclose(out, ref_out, atol=5e-2))
    assert bool(jnp.allclose(hn, ref_hn, atol=5e-2))
    assert bool(jnp.allclose(cn, ref_cn, atol=5e-2))

    print("KERNEL_OK")
</pallas_src>

<mosaic_0001>
module attributes {stable_mosaic.version = 11 : i64} {
  func.func @_seq_lstm_kernel(%arg0: memref<16x16xf32, #tpu.memory_space<vmem>>, %arg1: memref<2x32xf32, #tpu.memory_space<vmem>>, %arg2: memref<2x32xf32, #tpu.memory_space<vmem>>, %arg3: memref<16x128xf32, #tpu.memory_space<vmem>>, %arg4: memref<32x128xf32, #tpu.memory_space<vmem>>, %arg5: memref<1x128xf32, #tpu.memory_space<vmem>>, %arg6: memref<32x16xf32, #tpu.memory_space<vmem>>, %arg7: memref<1x16xf32, #tpu.memory_space<vmem>>, %arg8: memref<16x16xf32, #tpu.memory_space<vmem>>, %arg9: memref<2x32xf32, #tpu.memory_space<vmem>>, %arg10: memref<2x32xf32, #tpu.memory_space<vmem>>) attributes {dimension_semantics = [], scalar_prefetch = 0 : i64, scratch_operands = 0 : i64, tpu.core_type = #tpu.core_type<tc>} {
    %c0 = arith.constant 0 : index
    %c0_0 = arith.constant 0 : index
    %0 = vector.load %arg0[%c0, %c0_0] : memref<16x16xf32, #tpu.memory_space<vmem>>, vector<16x16xf32>
    %c0_1 = arith.constant 0 : index
    %c0_2 = arith.constant 0 : index
    %1 = vector.load %arg3[%c0_1, %c0_2] : memref<16x128xf32, #tpu.memory_space<vmem>>, vector<16x128xf32>
    %cst = arith.constant dense<0.000000e+00> : vector<16x128xf32>
    %2 = tpu.matmul %0, %1, %cst {dimension_numbers = #tpu.dot_dimension_numbers<[1], [0], [0], [1], [0, 0, 1, 1], [], []>} : vector<16x16xf32>, vector<16x128xf32>, vector<16x128xf32> -> vector<16x128xf32>
    %c0_3 = arith.constant 0 : index
    %c0_4 = arith.constant 0 : index
    %3 = vector.load %arg5[%c0_3, %c0_4] : memref<1x128xf32, #tpu.memory_space<vmem>>, vector<1x128xf32>
    %4 = vector.broadcast %3 : vector<1x128xf32> to vector<16x128xf32>
    %5 = arith.addf %2, %4 : vector<16x128xf32>
    %c0_5 = arith.constant 0 : index
    %c0_6 = arith.constant 0 : index
    %6 = vector.load %arg4[%c0_5, %c0_6] : memref<32x128xf32, #tpu.memory_space<vmem>>, vector<32x128xf32>
    %c0_7 = arith.constant 0 : index
    %c0_8 = arith.constant 0 : index
    %7 = vector.load %arg1[%c0_7, %c0_8] : memref<2x32xf32, #tpu.memory_space<vmem>>, vector<2x32xf32>
    %c0_9 = arith.constant 0 : index
    %c0_10 = arith.constant 0 : index
    %8 = vector.load %arg2[%c0_9, %c0_10] : memref<2x32xf32, #tpu.memory_space<vmem>>, vector<2x32xf32>
    %9 = vector.extract_strided_slice %5 {offsets = [0, 0], sizes = [2, 128], strides = [1, 1]} : vector<16x128xf32> to vector<2x128xf32>
    %cst_11 = arith.constant dense<0.000000e+00> : vector<2x128xf32>
    %10 = tpu.matmul %7, %6, %cst_11 {dimension_numbers = #tpu.dot_dimension_numbers<[1], [0], [0], [1], [0, 0, 1, 1], [], []>} : vector<2x32xf32>, vector<32x128xf32>, vector<2x128xf32> -> vector<2x128xf32>
    %11 = arith.addf %9, %10 : vector<2x128xf32>
    %12 = vector.extract_strided_slice %11 {offsets = [0, 0], sizes = [2, 96], strides = [1, 1]} : vector<2x128xf32> to vector<2x96xf32>
    %13 = arith.negf %12 : vector<2x96xf32>
    %14 = math.exp %13 : vector<2x96xf32>
    %cst_12 = arith.constant 1.000000e+00 : f32
    %15 = vector.broadcast %cst_12 : f32 to vector<2x96xf32>
    %16 = arith.addf %15, %14 : vector<2x96xf32>
    %17 = arith.divf %15, %16 : vector<2x96xf32>
    %18 = vector.extract_strided_slice %17 {offsets = [0, 0], sizes = [2, 32], strides = [1, 1]} : vector<2x96xf32> to vector<2x32xf32>
    %19 = vector.extract_strided_slice %17 {offsets = [0, 32], sizes = [2, 32], strides = [1, 1]} : vector<2x96xf32> to vector<2x32xf32>
    %20 = vector.extract_strided_slice %17 {offsets = [0, 64], sizes = [2, 32], strides = [1, 1]} : vector<2x96xf32> to vector<2x32xf32>
    %21 = vector.extract_strided_slice %11 {offsets = [0, 96], sizes = [2, 32], strides = [1, 1]} : vector<2x128xf32> to vector<2x32xf32>
    %22 = math.tanh %21 : vector<2x32xf32>
    %23 = arith.mulf %19, %8 : vector<2x32xf32>
    %24 = arith.mulf %18, %22 : vector<2x32xf32>
    %25 = arith.addf %23, %24 : vector<2x32xf32>
    %26 = math.tanh %25 : vector<2x32xf32>
    %27 = arith.mulf %20, %26 : vector<2x32xf32>
    %28 = vector.extract_strided_slice %5 {offsets = [2, 0], sizes = [2, 128], strides = [1, 1]} : vector<16x128xf32> to vector<2x128xf32>
    %cst_13 = arith.constant dense<0.000000e+00> : vector<2x128xf32>
    %29 = tpu.matmul %27, %6, %cst_13 {dimension_numbers = #tpu.dot_dimension_numbers<[1], [0], [0], [1], [0, 0, 1, 1], [], []>} : vector<2x32xf32>, vector<32x128xf32>, vector<2x128xf32> -> vector<2x128xf32>
    %30 = arith.addf %28, %29 : vector<2x128xf32>
    %31 = vector.extract_strided_slice %30 {offsets = [0, 0], sizes = [2, 96], strides = [1, 1]} : vector<2x128xf32> to vector<2x96xf32>
    %32 = arith.negf %31 : vector<2x96xf32>
    %33 = math.exp %32 : vector<2x96xf32>
    %cst_14 = arith.constant 1.000000e+00 : f32
    %34 = vector.broadcast %cst_14 : f32 to vector<2x96xf32>
    %35 = arith.addf %34, %33 : vector<2x96xf32>
    %36 = arith.divf %34, %35 : vector<2x96xf32>
    %37 = vector.extract_strided_slice %36 {offsets = [0, 0], sizes = [2, 32], strides = [1, 1]} : vector<2x96xf32> to vector<2x32xf32>
    %38 = vector.extract_strided_slice %36 {offsets = [0, 32], sizes = [2, 32], strides = [1, 1]} : vector<2x96xf32> to vector<2x32xf32>
    %39 = vector.extract_strided_slice %36 {offsets = [0, 64], sizes = [2, 32], strides = [1, 1]} : vector<2x96xf32> to vector<2x32xf32>
    %40 = vector.extract_strided_slice %30 {offsets = [0, 96], sizes = [2, 32], strides = [1, 1]} : vector<2x128xf32> to vector<2x32xf32>
    %41 = math.tanh %40 : vector<2x32xf32>
    %42 = arith.mulf %38, %25 : vector<2x32xf32>
    %43 = arith.mulf %37, %41 : vector<2x32xf32>
    %44 = arith.addf %42, %43 : vector<2x32xf32>
    %45 = math.tanh %44 : vector<2x32xf32>
    %46 = arith.mulf %39, %45 : vector<2x32xf32>
    %47 = vector.extract_strided_slice %5 {offsets = [4, 0], sizes = [2, 128], strides = [1, 1]} : vector<16x128xf32> to vector<2x128xf32>
    %cst_15 = arith.constant dense<0.000000e+00> : vector<2x128xf32>
    %48 = tpu.matmul %46, %6, %cst_15 {dimension_numbers = #tpu.dot_dimension_numbers<[1], [0], [0], [1], [0, 0, 1, 1], [], []>} : vector<2x32xf32>, vector<32x128xf32>, vector<2x128xf32> -> vector<2x128xf32>
    %49 = arith.addf %47, %48 : vector<2x128xf32>
    %50 = vector.extract_strided_slice %49 {offsets = [0, 0], sizes = [2, 96], strides = [1, 1]} : vector<2x128xf32> to vector<2x96xf32>
    %51 = arith.negf %50 : vector<2x96xf32>
    %52 = math.exp %51 : vector<2x96xf32>
    %cst_16 = arith.constant 1.000000e+00 : f32
    %53 = vector.broadcast %cst_16 : f32 to vector<2x96xf32>
    %54 = arith.addf %53, %52 : vector<2x96xf32>
    %55 = arith.divf %53, %54 : vector<2x96xf32>
    %56 = vector.extract_strided_slice %55 {offsets = [0, 0], sizes = [2, 32], strides = [1, 1]} : vector<2x96xf32> to vector<2x32xf32>
    %57 = vector.extract_strided_slice %55 {offsets = [0, 32], sizes = [2, 32], strides = [1, 1]} : vector<2x96xf32> to vector<2x32xf32>
    %58 = vector.extract_strided_slice %55 {offsets = [0, 64], sizes = [2, 32], strides = [1, 1]} : vector<2x96xf32> to vector<2x32xf32>
    %59 = vector.extract_strided_slice %49 {offsets = [0, 96], sizes = [2, 32], strides = [1, 1]} : vector<2x128xf32> to vector<2x32xf32>
    %60 = math.tanh %59 : vector<2x32xf32>
    %61 = arith.mulf %57, %44 : vector<2x32xf32>
    %62 = arith.mulf %56, %60 : vector<2x32xf32>
    %63 = arith.addf %61, %62 : vector<2x32xf32>
    %64 = math.tanh %63 : vector<2x32xf32>
    %65 = arith.mulf %58, %64 : vector<2x32xf32>
    %66 = vector.extract_strided_slice %5 {offsets = [6, 0], sizes = [2, 128], strides = [1, 1]} : vector<16x128xf32> to vector<2x128xf32>
    %cst_17 = arith.constant dense<0.000000e+00> : vector<2x128xf32>
    %67 = tpu.matmul %65, %6, %cst_17 {dimension_numbers = #tpu.dot_dimension_numbers<[1], [0], [0], [1], [0, 0, 1, 1], [], []>} : vector<2x32xf32>, vector<32x128xf32>, vector<2x128xf32> -> vector<2x128xf32>
    %68 = arith.addf %66, %67 : vector<2x128xf32>
    %69 = vector.extract_strided_slice %68 {offsets = [0, 0], sizes = [2, 96], strides = [1, 1]} : vector<2x128xf32> to vector<2x96xf32>
    %70 = arith.negf %69 : vector<2x96xf32>
    %71 = math.exp %70 : vector<2x96xf32>
    %cst_18 = arith.constant 1.000000e+00 : f32
    %72 = vector.broadcast %cst_18 : f32 to vector<2x96xf32>
    %73 = arith.addf %72, %71 : vector<2x96xf32>
    %74 = arith.divf %72, %73 : vector<2x96xf32>
    %75 = vector.extract_strided_slice %74 {offsets = [0, 0], sizes = [2, 32], strides = [1, 1]} : vector<2x96xf32> to vector<2x32xf32>
    %76 = vector.extract_strided_slice %74 {offsets = [0, 32], sizes = [2, 32], strides = [1, 1]} : vector<2x96xf32> to vector<2x32xf32>
    %77 = vector.extract_strided_slice %74 {offsets = [0, 64], sizes = [2, 32], strides = [1, 1]} : vector<2x96xf32> to vector<2x32xf32>
    %78 = vector.extract_strided_slice %68 {offsets = [0, 96], sizes = [2, 32], strides = [1, 1]} : vector<2x128xf32> to vector<2x32xf32>
    %79 = math.tanh %78 : vector<2x32xf32>
    %80 = arith.mulf %76, %63 : vector<2x32xf32>
    %81 = arith.mulf %75, %79 : vector<2x32xf32>
    %82 = arith.addf %80, %81 : vector<2x32xf32>
    %83 = math.tanh %82 : vector<2x32xf32>
    %84 = arith.mulf %77, %83 : vector<2x32xf32>
    %85 = vector.extract_strided_slice %5 {offsets = [8, 0], sizes = [2, 128], strides = [1, 1]} : vector<16x128xf32> to vector<2x128xf32>
    %cst_19 = arith.constant dense<0.000000e+00> : vector<2x128xf32>
    %86 = tpu.matmul %84, %6, %cst_19 {dimension_numbers = #tpu.dot_dimension_numbers<[1], [0], [0], [1], [0, 0, 1, 1], [], []>} : vector<2x32xf32>, vector<32x128xf32>, vector<2x128xf32> -> vector<2x128xf32>
    %87 = arith.addf %85, %86 : vector<2x128xf32>
    %88 = vector.extract_strided_slice %87 {offsets = [0, 0], sizes = [2, 96], strides = [1, 1]} : vector<2x128xf32> to vector<2x96xf32>
    %89 = arith.negf %88 : vector<2x96xf32>
    %90 = math.exp %89 : vector<2x96xf32>
    %cst_20 = arith.constant 1.000000e+00 : f32
    %91 = vector.broadcast %cst_20 : f32 to vector<2x96xf32>
    %92 = arith.addf %91, %90 : vector<2x96xf32>
    %93 = arith.divf %91, %92 : vector<2x96xf32>
    %94 = vector.extract_strided_slice %93 {offsets = [0, 0], sizes = [2, 32], strides = [1, 1]} : vector<2x96xf32> to vector<2x32xf32>
    %95 = vector.extract_strided_slice %93 {offsets = [0, 32], sizes = [2, 32], strides = [1, 1]} : vector<2x96xf32> to vector<2x32xf32>
    %96 = vector.extract_strided_slice %93 {offsets = [0, 64], sizes = [2, 32], strides = [1, 1]} : vector<2x96xf32> to vector<2x32xf32>
    %97 = vector.extract_strided_slice %87 {offsets = [0, 96], sizes = [2, 32], strides = [1, 1]} : vector<2x128xf32> to vector<2x32xf32>
    %98 = math.tanh %97 : vector<2x32xf32>
    %99 = arith.mulf %95, %82 : vector<2x32xf32>
    %100 = arith.mulf %94, %98 : vector<2x32xf32>
    %101 = arith.addf %99, %100 : vector<2x32xf32>
    %102 = math.tanh %101 : vector<2x32xf32>
    %103 = arith.mulf %96, %102 : vector<2x32xf32>
    %104 = vector.extract_strided_slice %5 {offsets = [10, 0], sizes = [2, 128], strides = [1, 1]} : vector<16x128xf32> to vector<2x128xf32>
    %cst_21 = arith.constant dense<0.000000e+00> : vector<2x128xf32>
    %105 = tpu.matmul %103, %6, %cst_21 {dimension_numbers = #tpu.dot_dimension_numbers<[1], [0], [0], [1], [0, 0, 1, 1], [], []>} : vector<2x32xf32>, vector<32x128xf32>, vector<2x128xf32> -> vector<2x128xf32>
    %106 = arith.addf %104, %105 : vector<2x128xf32>
    %107 = vector.extract_strided_slice %106 {offsets = [0, 0], sizes = [2, 96], strides = [1, 1]} : vector<2x128xf32> to vector<2x96xf32>
    %108 = arith.negf %107 : vector<2x96xf32>
    %109 = math.exp %108 : vector<2x96xf32>
    %cst_22 = arith.constant 1.000000e+00 : f32
    %110 = vector.broadcast %cst_22 : f32 to vector<2x96xf32>
    %111 = arith.addf %110, %109 : vector<2x96xf32>
    %112 = arith.divf %110, %111 : vector<2x96xf32>
    %113 = vector.extract_strided_slice %112 {offsets = [0, 0], sizes = [2, 32], strides = [1, 1]} : vector<2x96xf32> to vector<2x32xf32>
    %114 = vector.extract_strided_slice %112 {offsets = [0, 32], sizes = [2, 32], strides = [1, 1]} : vector<2x96xf32> to vector<2x32xf32>
    %115 = vector.extract_strided_slice %112 {offsets = [0, 64], sizes = [2, 32], strides = [1, 1]} : vector<2x96xf32> to vector<2x32xf32>
    %116 = vector.extract_strided_slice %106 {offsets = [0, 96], sizes = [2, 32], strides = [1, 1]} : vector<2x128xf32> to vector<2x32xf32>
    %117 = math.tanh %116 : vector<2x32xf32>
    %118 = arith.mulf %114, %101 : vector<2x32xf32>
    %119 = arith.mulf %113, %117 : vector<2x32xf32>
    %120 = arith.addf %118, %119 : vector<2x32xf32>
    %121 = math.tanh %120 : vector<2x32xf32>
    %122 = arith.mulf %115, %121 : vector<2x32xf32>
    %123 = vector.extract_strided_slice %5 {offsets = [12, 0], sizes = [2, 128], strides = [1, 1]} : vector<16x128xf32> to vector<2x128xf32>
    %cst_23 = arith.constant dense<0.000000e+00> : vector<2x128xf32>
    %124 = tpu.matmul %122, %6, %cst_23 {dimension_numbers = #tpu.dot_dimension_numbers<[1], [0], [0], [1], [0, 0, 1, 1], [], []>} : vector<2x32xf32>, vector<32x128xf32>, vector<2x128xf32> -> vector<2x128xf32>
    %125 = arith.addf %123, %124 : vector<2x128xf32>
    %126 = vector.extract_strided_slice %125 {offsets = [0, 0], sizes = [2, 96], strides = [1, 1]} : vector<2x128xf32> to vector<2x96xf32>
    %127 = arith.negf %126 : vector<2x96xf32>
    %128 = math.exp %127 : vector<2x96xf32>
    %cst_24 = arith.constant 1.000000e+00 : f32
    %129 = vector.broadcast %cst_24 : f32 to vector<2x96xf32>
    %130 = arith.addf %129, %128 : vector<2x96xf32>
    %131 = arith.divf %129, %130 : vector<2x96xf32>
    %132 = vector.extract_strided_slice %131 {offsets = [0, 0], sizes = [2, 32], strides = [1, 1]} : vector<2x96xf32> to vector<2x32xf32>
    %133 = vector.extract_strided_slice %131 {offsets = [0, 32], sizes = [2, 32], strides = [1, 1]} : vector<2x96xf32> to vector<2x32xf32>
    %134 = vector.extract_strided_slice %131 {offsets = [0, 64], sizes = [2, 32], strides = [1, 1]} : vector<2x96xf32> to vector<2x32xf32>
    %135 = vector.extract_strided_slice %125 {offsets = [0, 96], sizes = [2, 32], strides = [1, 1]} : vector<2x128xf32> to vector<2x32xf32>
    %136 = math.tanh %135 : vector<2x32xf32>
    %137 = arith.mulf %133, %120 : vector<2x32xf32>
    %138 = arith.mulf %132, %136 : vector<2x32xf32>
    %139 = arith.addf %137, %138 : vector<2x32xf32>
    %140 = math.tanh %139 : vector<2x32xf32>
    %141 = arith.mulf %134, %140 : vector<2x32xf32>
    %142 = vector.extract_strided_slice %5 {offsets = [14, 0], sizes = [2, 128], strides = [1, 1]} : vector<16x128xf32> to vector<2x128xf32>
    %cst_25 = arith.constant dense<0.000000e+00> : vector<2x128xf32>
    %143 = tpu.matmul %141, %6, %cst_25 {dimension_numbers = #tpu.dot_dimension_numbers<[1], [0], [0], [1], [0, 0, 1, 1], [], []>} : vector<2x32xf32>, vector<32x128xf32>, vector<2x128xf32> -> vector<2x128xf32>
    %144 = arith.addf %142, %143 : vector<2x128xf32>
    %145 = vector.extract_strided_slice %144 {offsets = [0, 0], sizes = [2, 96], strides = [1, 1]} : vector<2x128xf32> to vector<2x96xf32>
    %146 = arith.negf %145 : vector<2x96xf32>
    %147 = math.exp %146 : vector<2x96xf32>
    %cst_26 = arith.constant 1.000000e+00 : f32
    %148 = vector.broadcast %cst_26 : f32 to vector<2x96xf32>
    %149 = arith.addf %148, %147 : vector<2x96xf32>
    %150 = arith.divf %148, %149 : vector<2x96xf32>
    %151 = vector.extract_strided_slice %150 {offsets = [0, 0], sizes = [2, 32], strides = [1, 1]} : vector<2x96xf32> to vector<2x32xf32>
    %152 = vector.extract_strided_slice %150 {offsets = [0, 32], sizes = [2, 32], strides = [1, 1]} : vector<2x96xf32> to vector<2x32xf32>
    %153 = vector.extract_strided_slice %150 {offsets = [0, 64], sizes = [2, 32], strides = [1, 1]} : vector<2x96xf32> to vector<2x32xf32>
    %154 = vector.extract_strided_slice %144 {offsets = [0, 96], sizes = [2, 32], strides = [1, 1]} : vector<2x128xf32> to vector<2x32xf32>
    %155 = math.tanh %154 : vector<2x32xf32>
    %156 = arith.mulf %152, %139 : vector<2x32xf32>
    %157 = arith.mulf %151, %155 : vector<2x32xf32>
    %158 = arith.addf %156, %157 : vector<2x32xf32>
    %159 = math.tanh %158 : vector<2x32xf32>
    %160 = arith.mulf %153, %159 : vector<2x32xf32>
    %c0_27 = arith.constant 0 : index
    %c0_28 = arith.constant 0 : index
    %161 = vector.load %arg9[%c0_27, %c0_28] : memref<2x32xf32, #tpu.memory_space<vmem>>, vector<2x32xf32>
    tpu.vector_store %arg9[%c0_27, %c0_28], %160 {strides = array<i32>} : memref<2x32xf32, #tpu.memory_space<vmem>>, vector<2x32xf32>,
    %c0_29 = arith.constant 0 : index
    %c0_30 = arith.constant 0 : index
    %162 = vector.load %arg10[%c0_29, %c0_30] : memref<2x32xf32, #tpu.memory_space<vmem>>, vector<2x32xf32>
    tpu.vector_store %arg10[%c0_29, %c0_30], %158 {strides = array<i32>} : memref<2x32xf32, #tpu.memory_space<vmem>>, vector<2x32xf32>,
    %163 = tpu.concatenate %27, %46, %65, %84, %103, %122, %141, %160 in 0 : vector<2x32xf32>, vector<2x32xf32>, vector<2x32xf32>, vector<2x32xf32>, vector<2x32xf32>, vector<2x32xf32>, vector<2x32xf32>, vector<2x32xf32> -> vector<16x32xf32>
    %c0_31 = arith.constant 0 : index
    %c0_32 = arith.constant 0 : index
    %164 = vector.load %arg6[%c0_31, %c0_32] : memref<32x16xf32, #tpu.memory_space<vmem>>, vector<32x16xf32>
    %cst_33 = arith.constant dense<0.000000e+00> : vector<16x16xf32>
    %165 = tpu.matmul %163, %164, %cst_33 {dimension_numbers = #tpu.dot_dimension_numbers<[1], [0], [0], [1], [0, 0, 1, 1], [], []>} : vector<16x32xf32>, vector<32x16xf32>, vector<16x16xf32> -> vector<16x16xf32>
    %c0_34 = arith.constant 0 : index
    %c0_35 = arith.constant 0 : index
    %166 = vector.load %arg7[%c0_34, %c0_35] : memref<1x16xf32, #tpu.memory_space<vmem>>, vector<1x16xf32>
    %167 = vector.broadcast %166 : vector<1x16xf32> to vector<16x16xf32>
    %168 = arith.addf %165, %167 : vector<16x16xf32>
    %169 = vector.extract_strided_slice %168 {offsets = [0, 0], sizes = [2, 16], strides = [1, 1]} : vector<16x16xf32> to vector<2x16xf32>
    %170 = vector.extract_strided_slice %168 {offsets = [2, 0], sizes = [2, 16], strides = [1, 1]} : vector<16x16xf32> to vector<2x16xf32>
    %171 = vector.extract_strided_slice %168 {offsets = [4, 0], sizes = [2, 16], strides = [1, 1]} : vector<16x16xf32> to vector<2x16xf32>
    %172 = vector.extract_strided_slice %168 {offsets = [6, 0], sizes = [2, 16], strides = [1, 1]} : vector<16x16xf32> to vector<2x16xf32>
    %173 = vector.extract_strided_slice %168 {offsets = [8, 0], sizes = [2, 16], strides = [1, 1]} : vector<16x16xf32> to vector<2x16xf32>
    %174 = vector.extract_strided_slice %168 {offsets = [10, 0], sizes = [2, 16], strides = [1, 1]} : vector<16x16xf32> to vector<2x16xf32>
    %175 = vector.extract_strided_slice %168 {offsets = [12, 0], sizes = [2, 16], strides = [1, 1]} : vector<16x16xf32> to vector<2x16xf32>
    %176 = vector.extract_strided_slice %168 {offsets = [14, 0], sizes = [2, 16], strides = [1, 1]} : vector<16x16xf32> to vector<2x16xf32>
    %177 = arith.maximumf %169, %170 : vector<2x16xf32>
    %178 = arith.maximumf %177, %171 : vector<2x16xf32>
    %179 = arith.maximumf %178, %172 : vector<2x16xf32>
    %180 = arith.maximumf %179, %173 : vector<2x16xf32>
    %181 = arith.maximumf %180, %174 : vector<2x16xf32>
    %182 = arith.maximumf %181, %175 : vector<2x16xf32>
    %183 = arith.maximumf %182, %176 : vector<2x16xf32>
    %184 = arith.subf %169, %183 : vector<2x16xf32>
    %185 = math.exp %184 : vector<2x16xf32>
    %186 = arith.subf %170, %183 : vector<2x16xf32>
    %187 = math.exp %186 : vector<2x16xf32>
    %188 = arith.addf %185, %187 : vector<2x16xf32>
    %189 = arith.subf %171, %183 : vector<2x16xf32>
    %190 = math.exp %189 : vector<2x16xf32>
    %191 = arith.addf %188, %190 : vector<2x16xf32>
    %192 = arith.subf %172, %183 : vector<2x16xf32>
    %193 = math.exp %192 : vector<2x16xf32>
    %194 = arith.addf %191, %193 : vector<2x16xf32>
    %195 = arith.subf %173, %183 : vector<2x16xf32>
    %196 = math.exp %195 : vector<2x16xf32>
    %197 = arith.addf %194, %196 : vector<2x16xf32>
    %198 = arith.subf %174, %183 : vector<2x16xf32>
    %199 = math.exp %198 : vector<2x16xf32>
    %200 = arith.addf %197, %199 : vector<2x16xf32>
    %201 = arith.subf %175, %183 : vector<2x16xf32>
    %202 = math.exp %201 : vector<2x16xf32>
    %203 = arith.addf %200, %202 : vector<2x16xf32>
    %204 = arith.subf %176, %183 : vector<2x16xf32>
    %205 = math.exp %204 : vector<2x16xf32>
    %206 = arith.addf %203, %205 : vector<2x16xf32>
    %207 = math.log %206 : vector<2x16xf32>
    %208 = arith.addf %183, %207 : vector<2x16xf32>
    %209 = tpu.concatenate %208, %208, %208, %208, %208, %208, %208, %208 in 0 : vector<2x16xf32>, vector<2x16xf32>, vector<2x16xf32>, vector<2x16xf32>, vector<2x16xf32>, vector<2x16xf32>, vector<2x16xf32>, vector<2x16xf32> -> vector<16x16xf32>
    %210 = arith.subf %168, %209 : vector<16x16xf32>
    %c0_36 = arith.constant 0 : index
    %c0_37 = arith.constant 0 : index
    %211 = vector.load %arg8[%c0_36, %c0_37] : memref<16x16xf32, #tpu.memory_space<vmem>>, vector<16x16xf32>
    tpu.vector_store %arg8[%c0_36, %c0_37], %210 {strides = array<i32>} : memref<16x16xf32, #tpu.memory_space<vmem>>, vector<16x16xf32>,
    return
  }
}

</mosaic_0001>

<llo_original>
// kernel: tpu_custom_call.1
$region0: #{tpu_custom_call.1}
  #allocation0 [shape = 'u32[]', space=smem, size = 0x4, offset = 0x4, fixed_abs, tag = 'smem constant byte address 0x4 - core index']
  #allocation1 [shape = 'u32[72,128]{1,0:T(1,128)}', space=vmem, size = 0x9000, scoped, tag = 'internal scratch']
  %s0 = inlined_call_operand.vmem [shape: f32[16,16], index: 0, kind: input, shape index: {}]
  %s1 = inlined_call_operand.vmem [shape: f32[2,32], index: 1, kind: input, shape index: {}]
  %s2 = inlined_call_operand.hbm [shape: f32[2,32], index: 2, kind: input, shape index: {}]
  %s3 = inlined_call_operand.hbm [shape: f32[16,128], index: 3, kind: input, shape index: {}]
  %s4 = inlined_call_operand.vmem [shape: f32[32,128], index: 4, kind: input, shape index: {}]
  %s5 = inlined_call_operand.vmem [shape: f32[1,128], index: 5, kind: input, shape index: {}]
  %s6 = inlined_call_operand.vmem [shape: f32[32,16], index: 6, kind: input, shape index: {}]
  %s7 = inlined_call_operand.vmem [shape: f32[1,16], index: 7, kind: input, shape index: {}]
  %s8 = inlined_call_operand.hbm [shape: f32[16,16], index: 8, kind: output, shape index: {0}]
  %s9 = inlined_call_operand.hbm [shape: f32[2,32], index: 9, kind: output, shape index: {1}]
  %s10 = inlined_call_operand.hbm [shape: f32[2,32], index: 10, kind: output, shape index: {2}]
  %11 = xla_tuple %s8, %s9, %s10
  %s12 = sld [smem:[#allocation0]]
  $region66: #{tpu_custom_call.1} parent=0
    _
  %s14 = ssub.s32 1, %s12
  %s15 = scalar_select 0, %s14, %s12
  $region1: #{tpu_custom_call.1} parent=0
    #allocation2 [shape = 'u8[1024]{0}', space=vmem, size = 0x400, scoped, tag = 'input window, operand 2, single buffered']
    #allocation3 [shape = 's32[1]{0}', space=sflag, size = 0x4, scoped, tag = 'scoped memory for tpu_custom_call.1']
    #allocation4 [shape = 's32[1]{0}', space=sflag, size = 0x4, scoped, tag = 'scoped memory for tpu_custom_call.1']
    #allocation5 [shape = 'u8[8192]{0}', space=vmem, size = 0x2000, scoped, tag = 'input window, operand 3, single buffered']
    #allocation6 [shape = 's32[1]{0}', space=sflag, size = 0x4, scoped, tag = 'scoped memory for tpu_custom_call.1']
    #allocation7 [shape = 'u8[8192]{0}', space=vmem, size = 0x2000, scoped, tag = 'output window, operand 0, single buffered']
    #allocation8 [shape = 'u8[1024]{0}', space=vmem, size = 0x400, scoped, tag = 'output window, operand 1, single buffered']
    #allocation9 [shape = 's32[1]{0}', space=sflag, size = 0x4, scoped, tag = 'scoped memory for tpu_custom_call.1']
    #allocation10 [shape = 'u8[1024]{0}', space=vmem, size = 0x400, scoped, tag = 'output window, operand 2, single buffered']
    %16 = vsyncpa [#allocation3], 0
    %17 = vsyncpa [#allocation6], 0
    %18 = vsyncpa [#allocation4], 0
    %19 = vsyncpa [#allocation9], 0
    // Predicated region
    $region2: #{tpu_custom_call.1} parent=1 // pred_check
      _
    $region3: #{tpu_custom_call.1} parent=1 // pred_check_branch
      %21 = sbr.rel (0) target = $region5
    $region4: #{tpu_custom_call.1} parent=1 // pred_region
      _
    $region5: #{tpu_custom_call.1} parent=1 // pred_fallthru
      _
    // Predicated region
    $region6: #{tpu_custom_call.1} parent=1 // pred_check
      _
    $region7: #{tpu_custom_call.1} parent=1 // pred_check_branch
      %23 = sbr.rel (0) target = $region9
    $region8: #{tpu_custom_call.1} parent=1 // pred_region
      _
    $region9: #{tpu_custom_call.1} parent=1 // pred_fallthru
      _
    // Predicated region
    $region10: #{tpu_custom_call.1} parent=1 // pred_check
      _
    $region11: #{tpu_custom_call.1} parent=1 // pred_check_branch
      %25 = sbr.rel (0) target = $region13
    $region12: #{tpu_custom_call.1} parent=1 // pred_region
      %27 = vsyncadd [#allocation3], 0
      %s29 = sshll.u32 %s2, 4
      %s30 = int_to_ptr.hbm [resolvable:$true] %s29
      %s31 = sshll.u32 [#allocation2], 4
      %s32 = int_to_ptr.vmem [resolvable:$true] %s31
      %34 = dma.hbm_to_vmem [thread:$0]  %s30, 32, %s32, [#allocation3]
    $region13: #{tpu_custom_call.1} parent=1 // pred_fallthru
      _
    // Predicated region
    $region14: #{tpu_custom_call.1} parent=1 // pred_check
      _
    $region15: #{tpu_custom_call.1} parent=1 // pred_check_branch
      %36 = sbr.rel (0) target = $region17
    $region16: #{tpu_custom_call.1} parent=1 // pred_region
      %38 = vsyncadd [#allocation6], 0
      %s39 = sshll.u32 %s3, 4
      %s40 = int_to_ptr.hbm [resolvable:$true] %s39
      %s41 = sshll.u32 [#allocation5], 4
      %s42 = int_to_ptr.vmem [resolvable:$true] %s41
      %47 = dma.hbm_to_vmem [thread:$0]  %s40, 256, %s42, [#allocation6], 128, 128, 8
    $region17: #{tpu_custom_call.1} parent=1 // pred_fallthru
      _
    // Predicated region
    $region18: #{tpu_custom_call.1} parent=1 // pred_check
      _
    $region19: #{tpu_custom_call.1} parent=1 // pred_check_branch
      %49 = sbr.rel (0) target = $region21
    $region20: #{tpu_custom_call.1} parent=1 // pred_region
      _
    $region21: #{tpu_custom_call.1} parent=1 // pred_fallthru
      _
    // Predicated region
    $region22: #{tpu_custom_call.1} parent=1 // pred_check
      _
    $region23: #{tpu_custom_call.1} parent=1 // pred_check_branch
      %51 = sbr.rel (0) target = $region25
    $region24: #{tpu_custom_call.1} parent=1 // pred_region
      _
    $region25: #{tpu_custom_call.1} parent=1 // pred_fallthru
      _
    // Predicated region
    $region26: #{tpu_custom_call.1} parent=1 // pred_check
      _
    $region27: #{tpu_custom_call.1} parent=1 // pred_check_branch
      %53 = sbr.rel (0) target = $region29
    $region28: #{tpu_custom_call.1} parent=1 // pred_region
      _
    $region29: #{tpu_custom_call.1} parent=1 // pred_fallthru
      _
    // Predicated region
    $region30: #{tpu_custom_call.1} parent=1 // pred_check
      _
    $region31: #{tpu_custom_call.1} parent=1 // pred_check_branch
      %55 = sbr.rel (0) target = $region33
    $region32: #{tpu_custom_call.1} parent=1 // pred_region
      _
    $region33: #{tpu_custom_call.1} parent=1 // pred_fallthru
      _
    // Predicated region
    $region34: #{tpu_custom_call.1} parent=1 // pred_check
      _
    $region35: #{tpu_custom_call.1} parent=1 // pred_check_branch
      %57 = sbr.rel (0) target = $region37
    $region36: #{tpu_custom_call.1} parent=1 // pred_region
      %59 = dma.done [#allocation3], 32
    $region37: #{tpu_custom_call.1} parent=1 // pred_fallthru
      _
    // Predicated region
    $region38: #{tpu_custom_call.1} parent=1 // pred_check
      _
    $region39: #{tpu_custom_call.1} parent=1 // pred_check_branch
      %61 = sbr.rel (0) target = $region41
    $region40: #{tpu_custom_call.1} parent=1 // pred_region
      %63 = dma.done [#allocation6], 256
    $region41: #{tpu_custom_call.1} parent=1 // pred_fallthru
      _
    %v64 = vld [vmem:[%s0] sm:$0xff]
    %v65 = vld [vmem:[%s0 + $0x8] sm:$0xff]
    %v66 = vld [vmem:[#allocation5] sm:$0xff]
    %v67 = vld [vmem:[#allocation5 + $0x8] sm:$0xff]
    %v68 = vld [vmem:[%s5] sm:$0x1]
    %v70 = vperm.slane %v68, 0
    %vm72 = vcmask 130048
    %v74 = vsel %vm72, %v64, 0
    %v77 = vsel %vm72, %v65, 0
    %79 = vmatpush.msra.mxu0 0.0
    %80 = vmatpush.msra.mxu0 0.0
    %81 = vmatpush.msra.mxu0 0.0
    %82 = vmatpush.msra.mxu0 0.0
    %83 = vmatpush.msra.mxu0 0.0
    %84 = vmatpush.msra.mxu0 0.0
    %85 = vmatpush.msra.mxu0 0.0
    %86 = vmatpush.msra.mxu0 0.0
    %87 = vmatpush.msra.mxu0 0.0
    %88 = vmatpush.msra.mxu0 0.0
    %89 = vmatpush.msra.mxu0 0.0
    %90 = vmatpush.msra.mxu0 0.0
    %91 = vmatpush.msra.mxu0 0.0
    %92 = vmatpush.msra.mxu0 0.0
    %93 = vmatpush.msra.mxu0 %v67
    %94 = vmatpush.msra.mxu0 %v66
    %95 = vmatmul.f32.gmra.mxu0 %v74
    %v96 = vpop.f32.mrf.mxu0
    %v97 = vadd.f32 %v70, %v96
    %98 = vmatmul.f32.gmra.mxu0 %v77
    %v99 = vpop.f32.mrf.mxu0
    %v100 = vadd.f32 %v70, %v99
    %101 = vdwg.mxu0
    %v102 = vld [vmem:[%s4] sm:$0xff]
    %v103 = vld [vmem:[%s4 + $0x8] sm:$0xff]
    %v104 = vld [vmem:[%s4 + $0x10] sm:$0xff]
    %v105 = vld [vmem:[%s4 + $0x18] sm:$0xff]
    %v106 = vld [vmem:[%s1] sm:$0x3]
    %v107 = vld [vmem:[#allocation2] sm:$0x3]
    %vm108 = vcmask 261120
    %v110 = vsel %vm108, %v106, 0
    %112 = vmatpush.msra.mxu0 0.0
    %113 = vmatpush.msra.mxu0 0.0
    %114 = vmatpush.msra.mxu0 0.0
    %115 = vmatpush.msra.mxu0 0.0
    %116 = vmatpush.msra.mxu0 0.0
    %117 = vmatpush.msra.mxu0 0.0
    %118 = vmatpush.msra.mxu0 0.0
    %119 = vmatpush.msra.mxu0 0.0
    %120 = vmatpush.msra.mxu0 0.0
    %121 = vmatpush.msra.mxu0 0.0
    %122 = vmatpush.msra.mxu0 0.0
    %123 = vmatpush.msra.mxu0 0.0
    %124 = vmatpush.msra.mxu0 %v105
    %125 = vmatpush.msra.mxu0 %v104
    %126 = vmatpush.msra.mxu0 %v103
    %127 = vmatpush.msra.mxu0 %v102
    %128 = vmatmul.f32.gmra.mxu0 %v110
    %v129 = vpop.f32.mrf.mxu0
    %v130 = vadd.f32 0.0, %v129
    %131 = vdwg.mxu0
    %v132 = vadd.f32 %v97, %v130
    %v133 = vxor.u32 %v132, 2147483648
    %v134 = vmul.f32 %v133, 1.442695
    %v135 = vpow.pop %v134
    %v136 = vadd.f32 %v135, 1.0
    %v137 = vrcp.pop %v136
    %v138 = vmul.f32 %v136, %v137
    %v139 = vsub.f32 1.0, %v138
    %v140 = vmul.f32 %v137, %v139
    %v141 = vadd.f32 %v137, %v140
    %vm142 = vweird.f32 %v136
    %vm143 = vweird.f32 %v137
    %vm144 = vmor %vm142, %vm143
    %v145 = vsel %vm144, %v137, %v141
    %v146 = vand.u32 2147483647, %v136
    %vm147 = vcmp.eq.f32.partialorder %v146, 8.507059e+37
    %v148 = vand.u32 %v136, 2147483648
    %v149 = vor.u32 1.1754944e-38, %v148
    %v150 = vsel %vm147, %v149, %v145
    %v151 = vmul.f32 1.0, %v150
    %v152 = vtanh.pop %v132
    %154 = vrot.lane.b32.xlu0 %v107, 32
    %v155 = vpop.permute.xlu0 %154
    %v157 = vmul.f32 %v151, %v155
    %159 = vrot.lane.b32.xlu0 %v152, 32
    %v160 = vpop.permute.xlu0 %159
    %v162 = vmul.f32 %v151, %v160
    %164 = vrot.lane.b32.xlu0 %v162, 32
    %v165 = vpop.permute.xlu0 %164
    %v167 = vadd.f32 %v157, %v165
    %v168 = vtanh.pop %v167
    %170 = vrot.lane.b32.xlu0 %v168, 32
    %v171 = vpop.permute.xlu0 %170
    %v173 = vmul.f32 %v151, %v171
    %175 = vrot.lane.b32.xlu0 %v173, 64
    %v176 = vpop.permute.xlu0 %175
    %v177 = vsel %vm108, %v176, 0
    %179 = vmatpush.msra.mxu0 0.0
    %180 = vmatpush.msra.mxu0 0.0
    %181 = vmatpush.msra.mxu0 0.0
    %182 = vmatpush.msra.mxu0 0.0
    %183 = vmatpush.msra.mxu0 0.0
    %184 = vmatpush.msra.mxu0 0.0
    %185 = vmatpush.msra.mxu0 0.0
    %186 = vmatpush.msra.mxu0 0.0
    %187 = vmatpush.msra.mxu0 0.0
    %188 = vmatpush.msra.mxu0 0.0
    %189 = vmatpush.msra.mxu0 0.0
    %190 = vmatpush.msra.mxu0 0.0
    %191 = vmatpush.msra.mxu0 %v105
    %192 = vmatpush.msra.mxu0 %v104
    %193 = vmatpush.msra.mxu0 %v103
    %194 = vmatpush.msra.mxu0 %v102
    %195 = vmatmul.f32.gmra.mxu0 %v177
    %v196 = vpop.f32.mrf.mxu0
    %v197 = vadd.f32 0.0, %v196
    %198 = vdwg.mxu0
    %v200 = vrot.slane %v197, 6
    %v202 = vadd.f32 %v97, %v200
    %v203 = vxor.u32 %v202, 2147483648
    %v204 = vmul.f32 %v203, 1.442695
    %v205 = vpow.pop %v204
    %v206 = vadd.f32 %v205, 1.0
    %v207 = vrcp.pop %v206
    %v208 = vmul.f32 %v206, %v207
    %v209 = vsub.f32 1.0, %v208
    %v210 = vmul.f32 %v207, %v209
    %v211 = vadd.f32 %v207, %v210
    %vm212 = vweird.f32 %v206
    %vm213 = vweird.f32 %v207
    %vm214 = vmor %vm212, %vm213
    %v215 = vsel %vm214, %v207, %v211
    %v216 = vand.u32 2147483647, %v206
    %vm217 = vcmp.eq.f32.partialorder %v216, 8.507059e+37
    %v218 = vand.u32 %v206, 2147483648
    %v219 = vor.u32 1.1754944e-38, %v218
    %v220 = vsel %vm217, %v219, %v215
    %v221 = vmul.f32 1.0, %v220
    %v222 = vtanh.pop %v202
    %v224 = vrot.slane %v167, 6
    %v226 = vmul.f32 %v221, %v224
    %228 = vrot.lane.b32.xlu0 %v222, 32
    %v229 = vpop.permute.xlu0 %228
    %v231 = vmul.f32 %v221, %v229
    %233 = vrot.lane.b32.xlu0 %v231, 32
    %v234 = vpop.permute.xlu0 %233
    %v236 = vadd.f32 %v226, %v234
    %v237 = vtanh.pop %v236
    %239 = vrot.lane.b32.xlu0 %v237, 32
    %v240 = vpop.permute.xlu0 %239
    %v242 = vmul.f32 %v221, %v240
    %v244 = vrot.slane %v242, 2
    %245 = vrot.lane.b32.xlu0 %v244, 64
    %v246 = vpop.permute.xlu0 %245
    %v247 = vsel %vm108, %v246, 0
    %249 = vmatpush.msra.mxu0 0.0
    %250 = vmatpush.msra.mxu0 0.0
    %251 = vmatpush.msra.mxu0 0.0
    %252 = vmatpush.msra.mxu0 0.0
    %253 = vmatpush.msra.mxu0 0.0
    %254 = vmatpush.msra.mxu0 0.0
    %255 = vmatpush.msra.mxu0 0.0
    %256 = vmatpush.msra.mxu0 0.0
    %257 = vmatpush.msra.mxu0 0.0
    %258 = vmatpush.msra.mxu0 0.0
    %259 = vmatpush.msra.mxu0 0.0
    %260 = vmatpush.msra.mxu0 0.0
    %261 = vmatpush.msra.mxu0 %v105
    %262 = vmatpush.msra.mxu0 %v104
    %263 = vmatpush.msra.mxu0 %v103
    %264 = vmatpush.msra.mxu0 %v102
    %265 = vmatmul.f32.gmra.mxu0 %v247
    %v266 = vpop.f32.mrf.mxu0
    %v267 = vadd.f32 0.0, %v266
    %268 = vdwg.mxu0
    %v270 = vrot.slane %v267, 4
    %v272 = vadd.f32 %v97, %v270
    %v273 = vxor.u32 %v272, 2147483648
    %v274 = vmul.f32 %v273, 1.442695
    %v275 = vpow.pop %v274
    %v276 = vadd.f32 %v275, 1.0
    %v277 = vrcp.pop %v276
    %v278 = vmul.f32 %v276, %v277
    %v279 = vsub.f32 1.0, %v278
    %v280 = vmul.f32 %v277, %v279
    %v281 = vadd.f32 %v277, %v280
    %vm282 = vweird.f32 %v276
    %vm283 = vweird.f32 %v277
    %vm284 = vmor %vm282, %vm283
    %v285 = vsel %vm284, %v277, %v281
    %v286 = vand.u32 2147483647, %v276
    %vm287 = vcmp.eq.f32.partialorder %v286, 8.507059e+37
    %v288 = vand.u32 %v276, 2147483648
    %v289 = vor.u32 1.1754944e-38, %v288
    %v290 = vsel %vm287, %v289, %v285
    %v291 = vmul.f32 1.0, %v290
    %v292 = vtanh.pop %v272
    %v294 = vrot.slane %v236, 6
    %v296 = vmul.f32 %v291, %v294
    %298 = vrot.lane.b32.xlu0 %v292, 32
    %v299 = vpop.permute.xlu0 %298
    %v301 = vmul.f32 %v291, %v299
    %303 = vrot.lane.b32.xlu0 %v301, 32
    %v304 = vpop.permute.xlu0 %303
    %v306 = vadd.f32 %v296, %v304
    %v307 = vtanh.pop %v306
    %309 = vrot.lane.b32.xlu0 %v307, 32
    %v310 = vpop.permute.xlu0 %309
    %v312 = vmul.f32 %v291, %v310
    %v314 = vrot.slane %v312, 4
    %315 = vrot.lane.b32.xlu0 %v314, 64
    %v316 = vpop.permute.xlu0 %315
    %v317 = vsel %vm108, %v316, 0
    %319 = vmatpush.msra.mxu0 0.0
    %320 = vmatpush.msra.mxu0 0.0
    %321 = vmatpush.msra.mxu0 0.0
    %322 = vmatpush.msra.mxu0 0.0
    %323 = vmatpush.msra.mxu0 0.0
    %324 = vmatpush.msra.mxu0 0.0
    %325 = vmatpush.msra.mxu0 0.0
    %326 = vmatpush.msra.mxu0 0.0
    %327 = vmatpush.msra.mxu0 0.0
    %328 = vmatpush.msra.mxu0 0.0
    %329 = vmatpush.msra.mxu0 0.0
    %330 = vmatpush.msra.mxu0 0.0
    %331 = vmatpush.msra.mxu0 %v105
    %332 = vmatpush.msra.mxu0 %v104
    %333 = vmatpush.msra.mxu0 %v103
    %334 = vmatpush.msra.mxu0 %v102
    %335 = vmatmul.f32.gmra.mxu0 %v317
    %v336 = vpop.f32.mrf.mxu0
    %v337 = vadd.f32 0.0, %v336
    %338 = vdwg.mxu0
    %v340 = vrot.slane %v337, 2
    %v342 = vadd.f32 %v97, %v340
    %v343 = vxor.u32 %v342, 2147483648
    %v344 = vmul.f32 %v343, 1.442695
    %v345 = vpow.pop %v344
    %v346 = vadd.f32 %v345, 1.0
    %v347 = vrcp.pop %v346
    %v348 = vmul.f32 %v346, %v347
    %v349 = vsub.f32 1.0, %v348
    %v350 = vmul.f32 %v347, %v349
    %v351 = vadd.f32 %v347, %v350
    %vm352 = vweird.f32 %v346
    %vm353 = vweird.f32 %v347
    %vm354 = vmor %vm352, %vm353
    %v355 = vsel %vm354, %v347, %v351
    %v356 = vand.u32 2147483647, %v346
    %vm357 = vcmp.eq.f32.partialorder %v356, 8.507059e+37
    %v358 = vand.u32 %v346, 2147483648
    %v359 = vor.u32 1.1754944e-38, %v358
    %v360 = vsel %vm357, %v359, %v355
    %v361 = vmul.f32 1.0, %v360
    %v362 = vtanh.pop %v342
    %v364 = vrot.slane %v306, 6
    %v366 = vmul.f32 %v361, %v364
    %368 = vrot.lane.b32.xlu0 %v362, 32
    %v369 = vpop.permute.xlu0 %368
    %v371 = vmul.f32 %v361, %v369
    %373 = vrot.lane.b32.xlu0 %v371, 32
    %v374 = vpop.permute.xlu0 %373
    %v376 = vadd.f32 %v366, %v374
    %v377 = vtanh.pop %v376
    %379 = vrot.lane.b32.xlu0 %v377, 32
    %v380 = vpop.permute.xlu0 %379
    %v382 = vmul.f32 %v361, %v380
    %v384 = vrot.slane %v382, 6
    %385 = vrot.lane.b32.xlu0 %v384, 64
    %v386 = vpop.permute.xlu0 %385
    %v387 = vsel %vm108, %v386, 0
    %389 = vmatpush.msra.mxu0 0.0
    %390 = vmatpush.msra.mxu0 0.0
    %391 = vmatpush.msra.mxu0 0.0
    %392 = vmatpush.msra.mxu0 0.0
    %393 = vmatpush.msra.mxu0 0.0
    %394 = vmatpush.msra.mxu0 0.0
    %395 = vmatpush.msra.mxu0 0.0
    %396 = vmatpush.msra.mxu0 0.0
    %397 = vmatpush.msra.mxu0 0.0
    %398 = vmatpush.msra.mxu0 0.0
    %399 = vmatpush.msra.mxu0 0.0
    %400 = vmatpush.msra.mxu0 0.0
    %401 = vmatpush.msra.mxu0 %v105
    %402 = vmatpush.msra.mxu0 %v104
    %403 = vmatpush.msra.mxu0 %v103
    %404 = vmatpush.msra.mxu0 %v102
    %405 = vmatmul.f32.gmra.mxu0 %v387
    %v406 = vpop.f32.mrf.mxu0
    %v407 = vadd.f32 0.0, %v406
    %408 = vdwg.mxu0
    %v409 = vadd.f32 %v100, %v407
    %v410 = vxor.u32 %v409, 2147483648
    %v411 = vmul.f32 %v410, 1.442695
    %v412 = vpow.pop %v411
    %v413 = vadd.f32 %v412, 1.0
    %v414 = vrcp.pop %v413
    %v415 = vmul.f32 %v413, %v414
    %v416 = vsub.f32 1.0, %v415
    %v417 = vmul.f32 %v414, %v416
    %v418 = vadd.f32 %v414, %v417
    %vm419 = vweird.f32 %v413
    %vm420 = vweird.f32 %v414
    %vm421 = vmor %vm419, %vm420
    %v422 = vsel %vm421, %v414, %v418
    %v423 = vand.u32 2147483647, %v413
    %vm424 = vcmp.eq.f32.partialorder %v423, 8.507059e+37
    %v425 = vand.u32 %v413, 2147483648
    %v426 = vor.u32 1.1754944e-38, %v425
    %v427 = vsel %vm424, %v426, %v422
    %v428 = vmul.f32 1.0, %v427
    %v429 = vtanh.pop %v409
    %v431 = vrot.slane %v376, 6
    %v433 = vmul.f32 %v428, %v431
    %435 = vrot.lane.b32.xlu0 %v429, 32
    %v436 = vpop.permute.xlu0 %435
    %v438 = vmul.f32 %v428, %v436
    %440 = vrot.lane.b32.xlu0 %v438, 32
    %v441 = vpop.permute.xlu0 %440
    %v443 = vadd.f32 %v433, %v441
    %v444 = vtanh.pop %v443
    %446 = vrot.lane.b32.xlu0 %v444, 32
    %v447 = vpop.permute.xlu0 %446
    %v449 = vmul.f32 %v428, %v447
    %451 = vrot.lane.b32.xlu0 %v449, 64
    %v452 = vpop.permute.xlu0 %451
    %v453 = vsel %vm108, %v452, 0
    %455 = vmatpush.msra.mxu0 0.0
    %456 = vmatpush.msra.mxu0 0.0
    %457 = vmatpush.msra.mxu0 0.0
    %458 = vmatpush.msra.mxu0 0.0
    %459 = vmatpush.msra.mxu0 0.0
    %460 = vmatpush.msra.mxu0 0.0
    %461 = vmatpush.msra.mxu0 0.0
    %462 = vmatpush.msra.mxu0 0.0
    %463 = vmatpush.msra.mxu0 0.0
    %464 = vmatpush.msra.mxu0 0.0
    %465 = vmatpush.msra.mxu0 0.0
    %466 = vmatpush.msra.mxu0 0.0
    %467 = vmatpush.msra.mxu0 %v105
    %468 = vmatpush.msra.mxu0 %v104
    %469 = vmatpush.msra.mxu0 %v103
    %470 = vmatpush.msra.mxu0 %v102
    %471 = vmatmul.f32.gmra.mxu0 %v453
    %v472 = vpop.f32.mrf.mxu0
    %v473 = vadd.f32 0.0, %v472
    %474 = vdwg.mxu0
    %v476 = vrot.slane %v473, 6
    %v478 = vadd.f32 %v100, %v476
    %v479 = vxor.u32 %v478, 2147483648
    %v480 = vmul.f32 %v479, 1.442695
    %v481 = vpow.pop %v480
    %v482 = vadd.f32 %v481, 1.0
    %v483 = vrcp.pop %v482
    %v484 = vmul.f32 %v482, %v483
    %v485 = vsub.f32 1.0, %v484
    %v486 = vmul.f32 %v483, %v485
    %v487 = vadd.f32 %v483, %v486
    %vm488 = vweird.f32 %v482
    %vm489 = vweird.f32 %v483
    %vm490 = vmor %vm488, %vm489
    %v491 = vsel %vm490, %v483, %v487
    %v492 = vand.u32 2147483647, %v482
    %vm493 = vcmp.eq.f32.partialorder %v492, 8.507059e+37
    %v494 = vand.u32 %v482, 2147483648
    %v495 = vor.u32 1.1754944e-38, %v494
    %v496 = vsel %vm493, %v495, %v491
    %v497 = vmul.f32 1.0, %v496
    %v498 = vtanh.pop %v478
    %v500 = vrot.slane %v443, 6
    %v502 = vmul.f32 %v497, %v500
    %504 = vrot.lane.b32.xlu0 %v498, 32
    %v505 = vpop.permute.xlu0 %504
    %v507 = vmul.f32 %v497, %v505
    %509 = vrot.lane.b32.xlu0 %v507, 32
    %v510 = vpop.permute.xlu0 %509
    %v512 = vadd.f32 %v502, %v510
    %v513 = vtanh.pop %v512
    %515 = vrot.lane.b32.xlu0 %v513, 32
    %v516 = vpop.permute.xlu0 %515
    %v518 = vmul.f32 %v497, %v516
    %v520 = vrot.slane %v518, 2
    %521 = vrot.lane.b32.xlu0 %v520, 64
    %v522 = vpop.permute.xlu0 %521
    %v523 = vsel %vm108, %v522, 0
    %525 = vmatpush.msra.mxu0 0.0
    %526 = vmatpush.msra.mxu0 0.0
    %527 = vmatpush.msra.mxu0 0.0
    %528 = vmatpush.msra.mxu0 0.0
    %529 = vmatpush.msra.mxu0 0.0
    %530 = vmatpush.msra.mxu0 0.0
    %531 = vmatpush.msra.mxu0 0.0
    %532 = vmatpush.msra.mxu0 0.0
    %533 = vmatpush.msra.mxu0 0.0
    %534 = vmatpush.msra.mxu0 0.0
    %535 = vmatpush.msra.mxu0 0.0
    %536 = vmatpush.msra.mxu0 0.0
    %537 = vmatpush.msra.mxu0 %v105
    %538 = vmatpush.msra.mxu0 %v104
    %539 = vmatpush.msra.mxu0 %v103
    %540 = vmatpush.msra.mxu0 %v102
    %541 = vmatmul.f32.gmra.mxu0 %v523
    %v542 = vpop.f32.mrf.mxu0
    %v543 = vadd.f32 0.0, %v542
    %544 = vdwg.mxu0
    %v546 = vrot.slane %v543, 4
    %v548 = vadd.f32 %v100, %v546
    %v549 = vxor.u32 %v548, 2147483648
    %v550 = vmul.f32 %v549, 1.442695
    %v551 = vpow.pop %v550
    %v552 = vadd.f32 %v551, 1.0
    %v553 = vrcp.pop %v552
    %v554 = vmul.f32 %v552, %v553
    %v555 = vsub.f32 1.0, %v554
    %v556 = vmul.f32 %v553, %v555
    %v557 = vadd.f32 %v553, %v556
    %vm558 = vweird.f32 %v552
    %vm559 = vweird.f32 %v553
    %vm560 = vmor %vm558, %vm559
    %v561 = vsel %vm560, %v553, %v557
    %v562 = vand.u32 2147483647, %v552
    %vm563 = vcmp.eq.f32.partialorder %v562, 8.507059e+37
    %v564 = vand.u32 %v552, 2147483648
    %v565 = vor.u32 1.1754944e-38, %v564
    %v566 = vsel %vm563, %v565, %v561
    %v567 = vmul.f32 1.0, %v566
    %v568 = vtanh.pop %v548
    %v570 = vrot.slane %v512, 6
    %v572 = vmul.f32 %v567, %v570
    %574 = vrot.lane.b32.xlu0 %v568, 32
    %v575 = vpop.permute.xlu0 %574
    %v577 = vmul.f32 %v567, %v575
    %579 = vrot.lane.b32.xlu0 %v577, 32
    %v580 = vpop.permute.xlu0 %579
    %v582 = vadd.f32 %v572, %v580
    %v583 = vtanh.pop %v582
    %585 = vrot.lane.b32.xlu0 %v583, 32
    %v586 = vpop.permute.xlu0 %585
    %v588 = vmul.f32 %v567, %v586
    %v590 = vrot.slane %v588, 4
    %591 = vrot.lane.b32.xlu0 %v590, 64
    %v592 = vpop.permute.xlu0 %591
    %v593 = vsel %vm108, %v592, 0
    %595 = vmatpush.msra.mxu0 0.0
    %596 = vmatpush.msra.mxu0 0.0
    %597 = vmatpush.msra.mxu0 0.0
    %598 = vmatpush.msra.mxu0 0.0
    %599 = vmatpush.msra.mxu0 0.0
    %600 = vmatpush.msra.mxu0 0.0
    %601 = vmatpush.msra.mxu0 0.0
    %602 = vmatpush.msra.mxu0 0.0
    %603 = vmatpush.msra.mxu0 0.0
    %604 = vmatpush.msra.mxu0 0.0
    %605 = vmatpush.msra.mxu0 0.0
    %606 = vmatpush.msra.mxu0 0.0
    %607 = vmatpush.msra.mxu0 %v105
    %608 = vmatpush.msra.mxu0 %v104
    %609 = vmatpush.msra.mxu0 %v103
    %610 = vmatpush.msra.mxu0 %v102
    %611 = vmatmul.f32.gmra.mxu0 %v593
    %v612 = vpop.f32.mrf.mxu0
    %v613 = vadd.f32 0.0, %v612
    %614 = vdwg.mxu0
    %v616 = vrot.slane %v613, 2
    %v618 = vadd.f32 %v100, %v616
    %v619 = vxor.u32 %v618, 2147483648
    %v620 = vmul.f32 %v619, 1.442695
    %v621 = vpow.pop %v620
    %v622 = vadd.f32 %v621, 1.0
    %v623 = vrcp.pop %v622
    %v624 = vmul.f32 %v622, %v623
    %v625 = vsub.f32 1.0, %v624
    %v626 = vmul.f32 %v623, %v625
    %v627 = vadd.f32 %v623, %v626
    %vm628 = vweird.f32 %v622
    %vm629 = vweird.f32 %v623
    %vm630 = vmor %vm628, %vm629
    %v631 = vsel %vm630, %v623, %v627
    %v632 = vand.u32 2147483647, %v622
    %vm633 = vcmp.eq.f32.partialorder %v632, 8.507059e+37
    %v634 = vand.u32 %v622, 2147483648
    %v635 = vor.u32 1.1754944e-38, %v634
    %v636 = vsel %vm633, %v635, %v631
    %v637 = vmul.f32 1.0, %v636
    %v638 = vtanh.pop %v618
    %v640 = vrot.slane %v582, 6
    %v642 = vmul.f32 %v637, %v640
    %644 = vrot.lane.b32.xlu0 %v638, 32
    %v645 = vpop.permute.xlu0 %644
    %v647 = vmul.f32 %v637, %v645
    %649 = vrot.lane.b32.xlu0 %v647, 32
    %v650 = vpop.permute.xlu0 %649
    %v652 = vadd.f32 %v642, %v650
    %v653 = vtanh.pop %v652
    %655 = vrot.lane.b32.xlu0 %v653, 32
    %v656 = vpop.permute.xlu0 %655
    %v658 = vmul.f32 %v637, %v656
    %660 = vrot.lane.b32.xlu0 %v658, 64
    %v661 = vpop.permute.xlu0 %660
    %vm663 = vcmask 261126
    %664 = vst.msk [vmem:[#allocation8 - $0x6] sm:$0xc0] %vm663, %v661
    %666 = vrot.lane.b32.xlu0 %v652, 96
    %v667 = vpop.permute.xlu0 %666
    %669 = vst.msk [vmem:[#allocation10 - $0x6] sm:$0xc0] %vm663, %v667
    %vm670 = vcmask 1041408
    %v671 = vsel %vm670, %v173, %v242
    %vm672 = vcmask 1043456
    %v673 = vsel %vm672, %v671, %v312
    %vm674 = vcmask 1045504
    %v675 = vsel %vm674, %v673, %v382
    %v676 = vsel %vm670, %v449, %v518
    %v677 = vsel %vm672, %v676, %v588
    %v678 = vsel %vm674, %v677, %v658
    %v679 = vld [vmem:[%s6] sm:$0xff]
    %v680 = vld [vmem:[%s6 + $0x8] sm:$0xff]
    %v681 = vld [vmem:[%s6 + $0x10] sm:$0xff]
    %v682 = vld [vmem:[%s6 + $0x18] sm:$0xff]
    %v683 = vld [vmem:[%s7] sm:$0x1]
    %v685 = vperm.slane %v683, 0
    %689 = vrot.lane.b32.xlu0 %v675, 64
    %v690 = vpop.permute.xlu0 %689
    %691 = vrot.lane.b32.xlu0 %v678, 64
    %v692 = vpop.permute.xlu0 %691
    %v693 = vsel %vm108, %v690, 0
    %v695 = vsel %vm108, %v692, 0
    %697 = vmatpush.msra.mxu0 0.0
    %698 = vmatpush.msra.mxu0 0.0
    %699 = vmatpush.msra.mxu0 0.0
    %700 = vmatpush.msra.mxu0 0.0
    %701 = vmatpush.msra.mxu0 0.0
    %702 = vmatpush.msra.mxu0 0.0
    %703 = vmatpush.msra.mxu0 0.0
    %704 = vmatpush.msra.mxu0 0.0
    %705 = vmatpush.msra.mxu0 0.0
    %706 = vmatpush.msra.mxu0 0.0
    %707 = vmatpush.msra.mxu0 0.0
    %708 = vmatpush.msra.mxu0 0.0
    %709 = vmatpush.msra.mxu0 %v682
    %710 = vmatpush.msra.mxu0 %v681
    %711 = vmatpush.msra.mxu0 %v680
    %712 = vmatpush.msra.mxu0 %v679
    %713 = vmatmul.f32.gmra.mxu0 %v693
    %v714 = vpop.f32.mrf.mxu0
    %v715 = vadd.f32 %v685, %v714
    %716 = vmatmul.f32.gmra.mxu0 %v695
    %v717 = vpop.f32.mrf.mxu0
    %v718 = vadd.f32 %v685, %v717
    %719 = vdwg.mxu0
    %v721 = vrot.slane %v715, 2
    %v723 = vmax.f32 %v715, %v721
    %v724 = vrot.slane %v715, 4
    %v726 = vmax.f32 %v723, %v724
    %v727 = vrot.slane %v715, 6
    %v729 = vmax.f32 %v726, %v727
    %v730 = vmax.f32 %v729, %v718
    %v732 = vrot.slane %v718, 2
    %v734 = vmax.f32 %v730, %v732
    %v735 = vrot.slane %v718, 4
    %v737 = vmax.f32 %v734, %v735
    %v738 = vrot.slane %v718, 6
    %v740 = vmax.f32 %v737, %v738
    %v741 = vsub.f32 %v715, %v740
    %v742 = vmul.f32 %v741, 1.442695
    %v743 = vpow.pop %v742
    %v745 = vrot.slane %v740, 6
    %v747 = vsub.f32 %v715, %v745
    %v748 = vmul.f32 %v747, 1.442695
    %v749 = vpow.pop %v748
    %v751 = vrot.slane %v749, 2
    %v753 = vadd.f32 %v743, %v751
    %v754 = vrot.slane %v740, 4
    %v756 = vsub.f32 %v715, %v754
    %v757 = vmul.f32 %v756, 1.442695
    %v758 = vpow.pop %v757
    %v760 = vrot.slane %v758, 4
    %v762 = vadd.f32 %v753, %v760
    %v763 = vrot.slane %v740, 2
    %v765 = vsub.f32 %v715, %v763
    %v766 = vmul.f32 %v765, 1.442695
    %v767 = vpow.pop %v766
    %v769 = vrot.slane %v767, 6
    %v771 = vadd.f32 %v762, %v769
    %v772 = vsub.f32 %v718, %v740
    %v773 = vmul.f32 %v772, 1.442695
    %v774 = vpow.pop %v773
    %v775 = vadd.f32 %v771, %v774
    %v776 = vsub.f32 %v718, %v745
    %v777 = vmul.f32 %v776, 1.442695
    %v778 = vpow.pop %v777
    %v780 = vrot.slane %v778, 2
    %v782 = vadd.f32 %v775, %v780
    %v783 = vsub.f32 %v718, %v754
    %v784 = vmul.f32 %v783, 1.442695
    %v785 = vpow.pop %v784
    %v787 = vrot.slane %v785, 4
    %v789 = vadd.f32 %v782, %v787
    %v790 = vsub.f32 %v718, %v763
    %v791 = vmul.f32 %v790, 1.442695
    %v792 = vpow.pop %v791
    %v794 = vrot.slane %v792, 6
    %v796 = vadd.f32 %v789, %v794
    %v797 = vlog2.pop %v796
    %v798 = vmul.f32 %v797, 0.6931472
    %v799 = vadd.f32 %v740, %v798
    %v801 = vrot.slane %v799, 6
    %v803 = vrot.slane %v799, 4
    %v805 = vrot.slane %v799, 2
    %v807 = vsel %vm670, %v799, %v801
    %v808 = vsel %vm672, %v807, %v803
    %v809 = vsel %vm674, %v808, %v805
    %v810 = vsub.f32 %v715, %v809
    %v811 = vsub.f32 %v718, %v809
    %812 = vst.msk [vmem:[#allocation7] sm:$0xff] %vm72, %v810
    %813 = vst.msk [vmem:[#allocation7 + $0x8] sm:$0xff] %vm72, %v811
    // Predicated region
    $region42: #{tpu_custom_call.1} parent=1 // pred_check
      _
    $region43: #{tpu_custom_call.1} parent=1 // pred_check_branch
      %815 = sbr.rel (0) target = $region45
    $region44: #{tpu_custom_call.1} parent=1 // pred_region
      %817 = vsyncadd [#allocation4], 0
      %s818 = sshll.u32 [#allocation7], 4
      %s819 = int_to_ptr.vmem [resolvable:$true] %s818
      %s820 = sshll.u32 %s8, 4
      %s821 = int_to_ptr.hbm [resolvable:$true] %s820
      %826 = dma.vmem_to_hbm [thread:$0]  %s819, 256, %s821, [#allocation4], 128, 128, 8
    $region45: #{tpu_custom_call.1} parent=1 // pred_fallthru
      _
    // Predicated region
    $region46: #{tpu_custom_call.1} parent=1 // pred_check
      _
    $region47: #{tpu_custom_call.1} parent=1 // pred_check_branch
      %828 = sbr.rel (0) target = $region49
    $region48: #{tpu_custom_call.1} parent=1 // pred_region
      %830 = vsyncadd [#allocation9], 0
      %s832 = sshll.u32 [#allocation8], 4
      %s833 = int_to_ptr.vmem [resolvable:$true] %s832
      %s834 = sshll.u32 %s9, 4
      %s835 = int_to_ptr.hbm [resolvable:$true] %s834
      %837 = dma.vmem_to_hbm [thread:$0]  %s833, 32, %s835, [#allocation9]
    $region49: #{tpu_custom_call.1} parent=1 // pred_fallthru
      _
    // Predicated region
    $region50: #{tpu_custom_call.1} parent=1 // pred_check
      _
    $region51: #{tpu_custom_call.1} parent=1 // pred_check_branch
      %839 = sbr.rel (0) target = $region53
    $region52: #{tpu_custom_call.1} parent=1 // pred_region
      %841 = vsyncadd [#allocation9], 0
      %s843 = sshll.u32 [#allocation10], 4
      %s844 = int_to_ptr.vmem [resolvable:$true] %s843
      %s845 = sshll.u32 %s10, 4
      %s846 = int_to_ptr.hbm [resolvable:$true] %s845
      %848 = dma.vmem_to_hbm [thread:$0]  %s844, 32, %s846, [#allocation9]
    $region53: #{tpu_custom_call.1} parent=1 // pred_fallthru
      _
    // Predicated region
    $region54: #{tpu_custom_call.1} parent=1 // pred_check
      _
    $region55: #{tpu_custom_call.1} parent=1 // pred_check_branch
      %850 = sbr.rel (0) target = $region57
    $region56: #{tpu_custom_call.1} parent=1 // pred_region
      %852 = dma.done [#allocation4], 256
    $region57: #{tpu_custom_call.1} parent=1 // pred_fallthru
      _
    // Predicated region
    $region58: #{tpu_custom_call.1} parent=1 // pred_check
      _
    $region59: #{tpu_custom_call.1} parent=1 // pred_check_branch
      %854 = sbr.rel (0) target = $region61
    $region60: #{tpu_custom_call.1} parent=1 // pred_region
      %856 = dma.done [#allocation9], 32
    $region61: #{tpu_custom_call.1} parent=1 // pred_fallthru
      _
    // Predicated region
    $region62: #{tpu_custom_call.1} parent=1 // pred_check
      _
    $region63: #{tpu_custom_call.1} parent=1 // pred_check_branch
      %858 = sbr.rel (0) target = $region65
    $region64: #{tpu_custom_call.1} parent=1 // pred_region
      %860 = dma.done [#allocation9], 32
    $region65: #{tpu_custom_call.1} parent=1 // pred_fallthru
      _
    %861 = vsyncpa [#allocation3], 1
    %862 = vsyncpa [#allocation6], 1
    %863 = vsyncpa [#allocation4], 1
    %864 = vsyncpa [#allocation9], 1

</llo_original>
